<compile_context>
chip_gen: v5e
topology: v5e:2x2
jax: 0.10.0
libtpu: 0.0.40
codegen_flags: <defaults>
</compile_context>

<pallas_src>
import numpy as np
import jax
import jax.numpy as jnp
from jax.experimental import pallas as pl
from jax.experimental.pallas import tpu as pltpu


def _make_ce_kernel(C, emit_pred):
    """Kernel factory. One tile: logits_ref (C, RT, 128), labels_ref (RT, 128) int32.

    Writes a (1, 8, 128) f32 slab:
      sublane 0, lanes 0..2 : [loss_sum, valid_cnt, correct_cnt]
      sublane 1, lanes 0..C-1 : per-class label counts
      sublane 2, lanes 0..C-1 : per-class correct-prediction counts
    and (optionally) a lane-dense pred (RT, 128) int32 output.
    """

    def kernel(logits_ref, labels_ref, partial_ref, *maybe_pred):
        pred_ref = maybe_pred[0] if emit_pred else None
        lab = labels_ref[...]                       # (RT, 128) int32

        # ---- fused max + argmax over the class axis, in the NATIVE dtype ----
        # (packed bf16 compare/select on v6e/v7x; first-max tie-break)
        best = logits_ref[0]
        pred = jnp.zeros(lab.shape, jnp.int32)
        for c in range(1, C):                       # C is small & static -> unrolled VPU work
            xc = logits_ref[c]
            gt = xc > best
            best = jnp.where(gt, xc, best)
            pred = jnp.where(gt, jnp.int32(c), pred)
        best_f32 = best.astype(jnp.float32)

        # ---- numerically stable log-softmax cross entropy (reuses `best` as the max) ----
        sumexp = jnp.zeros_like(best_f32)
        picked = jnp.zeros_like(best_f32)
        for c in range(C):
            zc = logits_ref[c].astype(jnp.float32) - best_f32
            sumexp = sumexp + jnp.exp(zc)
            picked = picked + jnp.where(lab == c, zc, 0.0)   # no onehot materialization
        lse = jnp.log(sumexp)

        valid = lab != jnp.int32(-1)                # ignore_index = -1 (also masks padding)
        row_loss = jnp.where(valid, lse - picked, 0.0)

        if emit_pred:
            pred_ref[...] = pred                    # lane-dense int32 store

        loss_part = jnp.sum(row_loss)
        valid_part = jnp.sum(valid.astype(jnp.float32))
        correct_part = jnp.sum((pred == lab).astype(jnp.float32))

        # pack per-tile scalars + per-class tallies into one lane-dense (8, 128) slab
        sub = jax.lax.broadcasted_iota(jnp.int32, (8, 128), 0)
        lane = jax.lax.broadcasted_iota(jnp.int32, (8, 128), 1)
        slab = jnp.where((sub == 0) & (lane == 0), loss_part,
               jnp.where((sub == 0) & (lane == 1), valid_part,
               jnp.where((sub == 0) & (lane == 2), correct_part,
                         jnp.zeros((8, 128), jnp.float32))))
        for c in range(C):                          # in-kernel per-class tallies (no wrapper scatter)
            cls = lab == c
            total_c = jnp.sum(cls.astype(jnp.float32))
            corr_c = jnp.sum((cls & (pred == c)).astype(jnp.float32))
            slab = jnp.where((sub == 1) & (lane == c), total_c, slab)
            slab = jnp.where((sub == 2) & (lane == c), corr_c, slab)
        partial_ref[...] = slab[None]               # (1, 8, 128)

    return kernel


def _choose_tile_rows(n, c, itemsize):
    """Rows per tile: ~2 MiB of logits HBM data, multiple of 2048 (RT%16==0, bf16-safe)."""
    n_min = ((n + 127) // 128) * 128                # N rounded up to the 128-lane width
    budget = 2 * 1024 * 1024                        # ~2 MiB of logits per tile (1-4 MiB target)
    tn = budget // max(c * itemsize, 1)
    tn = (tn // 2048) * 2048
    tn = max(2048, min(tn, 256 * 1024))
    if n_min <= tn:
        return n_min                                # single tile: blocks == full array dims
    return tn


def _vmem_limit_bytes(C, RT, itemsize, return_pred):
    """Actual per-tile footprint: double-buffered blocks + elementwise f32 temporaries."""
    blk_logits = C * RT * 128 * itemsize
    blk_labels = RT * 128 * 4
    blk_pred = RT * 128 * 4 if return_pred else 0
    blk_part = 8 * 128 * 4
    dbuf = 2 * (blk_logits + blk_labels + blk_pred + blk_part)
    temps = 10 * RT * 128 * 4                       # best/pred/sumexp/picked/lse/... live values
    need = dbuf + temps + (2 << 20)                 # headroom
    return int(min(max(need, 16 << 20), 30 << 20))  # stays under v7x's 64 MiB physical VMEM


def single_particle_loss(logits, labels, *, tile_rows=None, return_pred=False,
                         class_major=False):
    """logits: [N, C] (or [C, N] if class_major=True), f32 or bf16; labels: [N] int (-1 = ignore).

    Returns (res, aux): res = {'loss', 'accuracy'} device scalars;
    aux = {'class_correct', 'class_total', 'valid_count', 'num_samples'} (+ 'pred' if requested).
    """
    logits = jnp.asarray(logits)
    labels = jnp.asarray(labels, jnp.int32)
    if class_major:
        C, N = logits.shape
    else:
        N, C = logits.shape
    assert labels.shape[0] == N
    assert C <= 128, "per-class tallies are packed into one 128-lane slab row"
    itemsize = int(np.dtype(logits.dtype).itemsize)

    n_min = ((N + 127) // 128) * 128
    TN = _choose_tile_rows(N, C, itemsize) if tile_rows is None else int(tile_rows)
    if n_min <= TN:
        TN = n_min                                  # single-tile fast path
    else:
        assert TN % 2048 == 0, "multi-tile path requires tile_rows % 2048 == 0 (bf16-safe RT%16)"

    num_tiles = pl.cdiv(N, TN)
    # v7x has 2 TensorCores sharing the 'parallel' axis: prefer an even, balanced tile count.
    if tile_rows is None and 1 < num_tiles <= 15 and num_tiles % 2 == 1:
        tn2 = ((pl.cdiv(N, num_tiles + 1) + 2047) // 2048) * 2048
        if tn2 >= 2048:
            TN = tn2
            num_tiles = pl.cdiv(N, TN)

    N_pad = num_tiles * TN
    RT = TN // 128                                  # sublane-rows per tile
    R_total = N_pad // 128

    # Layout plumbing (layout only, not compute hoisting):
    #   class_major:  logits [C, N] -> (C, N_pad/128, 128)   pure row-major fold, no transpose
    #   row-major:    logits [N, C] -> (C, N_pad/128, 128)   one fused pad+transpose pass
    if class_major:
        logits_t = jnp.pad(logits, ((0, 0), (0, N_pad - N))).reshape(C, R_total, 128)
    else:
        logits_t = jnp.pad(logits, ((0, N_pad - N), (0, 0))).T.reshape(C, R_total, 128)
    labels_p = jnp.pad(labels, (0, N_pad - N), constant_values=-1).reshape(R_total, 128)

    cost = pl.CostEstimate(
        flops=int(10 * N_pad * C),
        transcendentals=int(N_pad * (C + 1)),
        bytes_accessed=int(N_pad * C * itemsize                # logits read
                           + N_pad * 4                          # labels read
                           + num_tiles * 8 * 128 * 4            # partial slabs write
                           + (N_pad * 4 if return_pred else 0)  # optional pred write
                           ),
    )

    out_shape = [jax.ShapeDtypeStruct((num_tiles, 8, 128), jnp.float32)]
    out_specs = [pl.BlockSpec((1, 8, 128), lambda i: (i, 0, 0))]
    if return_pred:
        out_shape.append(jax.ShapeDtypeStruct((R_total, 128), jnp.int32))
        out_specs.append(pl.BlockSpec((RT, 128), lambda i: (i, 0)))

    outs = pl.pallas_call(
        _make_ce_kernel(C, return_pred),
        out_shape=tuple(out_shape),
        grid=(num_tiles,),
        in_specs=[
            pl.BlockSpec((C, RT, 128), lambda i: (0, i, 0)),
            pl.BlockSpec((RT, 128), lambda i: (i, 0)),
        ],
        out_specs=tuple(out_specs),
        compiler_params=pltpu.CompilerParams(
            dimension_semantics=("parallel",),      # no cross-tile state -> v7x can split TCs
            vmem_limit_bytes=_vmem_limit_bytes(C, RT, itemsize, return_pred),
        ),
        cost_estimate=cost,
    )(logits_t, labels_p)

    if return_pred:
        partials, pred2d = outs
    else:
        partials = outs[0] if isinstance(outs, (tuple, list)) else outs
        pred2d = None

    loss_sum = jnp.sum(partials[:, 0, 0])
    valid_cnt = jnp.sum(partials[:, 0, 1])
    correct_cnt = jnp.sum(partials[:, 0, 2])
    class_total = jnp.sum(partials[:, 1, :C], axis=0)      # (C,)
    class_correct = jnp.sum(partials[:, 2, :C], axis=0)    # (C,)

    # mean over non-ignored rows; all-ignored batch -> 0/0 = NaN (matches PyTorch)
    loss = loss_sum / valid_cnt
    accuracy = correct_cnt / jnp.float32(N)

    res = {'loss': loss, 'accuracy': accuracy}
    aux = {'class_correct': class_correct, 'class_total': class_total,
           'valid_count': valid_cnt, 'num_samples': N}
    if return_pred:
        aux['pred'] = pred2d.reshape(N_pad)[:N]
    return res, aux


def acc_types_dict(labels, aux):
    """Optional host-side glue (device->host sync) mirroring the module's acc_types dict.

    The original forward computes this dict and then discards it, so it is kept out of
    the hot path and fed entirely from the in-kernel per-class tallies."""
    labels_np = np.asarray(labels)
    correct = np.asarray(aux['class_correct'])
    total = np.asarray(aux['class_total'])
    n = float(aux['num_samples'])
    valid = float(np.asarray(aux['valid_count']))
    out = {}
    for c in np.unique(labels_np):
        ci = int(c)
        if ci >= 0:
            out['accuracy_{}'.format(ci)] = float(correct[ci]) / float(total[ci])
        else:
            # ignore_index bucket: argmax is never -1, so correct count is 0
            out['accuracy_{}'.format(ci)] = 0.0 / (n - valid)
    return out


def _reference_loss(logits, labels):
    """Pure-JAX reference for CrossEntropyLoss(ignore_index=-1)."""
    logits = jnp.asarray(logits, jnp.float32)
    labels = jnp.asarray(labels, jnp.int32)
    valid = labels != -1
    safe_labels = jnp.where(valid, labels, 0)
    logz = jax.nn.logsumexp(logits, axis=-1)
    picked = jnp.take_along_axis(logits, safe_labels[:, None], axis=-1)[:, 0]
    per_row = jnp.where(valid, logz - picked, 0.0)
    return jnp.sum(per_row) / jnp.sum(valid.astype(jnp.float32))


if __name__ == "__main__":
    key = jax.random.PRNGKey(0)
    k1, k2, k3, k4, k5 = jax.random.split(key, 5)

    # --- small case matching the module: 8 samples, 5 particle types, one ignored row ---
    N, C = 8, 5
    logits = jax.random.normal(k1, (N, C), dtype=jnp.float32)
    labels = jax.random.randint(k2, (N,), 0, C, dtype=jnp.int32).at[3].set(-1)

    res, aux = single_particle_loss(logits, labels, return_pred=True)
    jax.block_until_ready(res['loss'])

    ref_loss = _reference_loss(logits, labels)
    assert np.allclose(float(res['loss']), float(ref_loss), rtol=1e-5, atol=1e-5), \
        (float(res['loss']), float(ref_loss))
    labels_np = np.asarray(labels)
    ref_pred = np.argmax(np.asarray(logits), axis=1)
    assert np.array_equal(np.asarray(aux['pred']), ref_pred)
    ref_acc = float(np.sum(ref_pred == labels_np)) / float(N)
    assert abs(float(res['accuracy']) - ref_acc) < 1e-6
    acc_types = acc_types_dict(labels, aux)
    for c in np.unique(labels_np):
        m = labels_np == c
        ref_c = float(np.sum(ref_pred[m] == labels_np[m])) / float(np.sum(m))
        assert abs(acc_types['accuracy_{}'.format(int(c))] - ref_c) < 1e-6

    # --- multi-tile f32 path: grid > 1, padding, ignored rows, no pred writeback ---
    N2 = 5000
    logits2 = jax.random.normal(k3, (N2, C), dtype=jnp.float32)
    labels2 = jax.random.randint(k4, (N2,), -1, C, dtype=jnp.int32)  # includes ignored rows
    res2, aux2 = single_particle_loss(logits2, labels2, tile_rows=2048)
    jax.block_until_ready(res2['loss'])

    ref_loss2 = _reference_loss(logits2, labels2)
    assert np.allclose(float(res2['loss']), float(ref_loss2), rtol=1e-5, atol=1e-5), \
        (float(res2['loss']), float(ref_loss2))
    labels2_np = np.asarray(labels2)
    ref_pred2 = np.argmax(np.asarray(logits2), axis=1)
    ref_acc2 = float(np.sum(ref_pred2 == labels2_np)) / float(N2)
    assert abs(float(res2['accuracy']) - ref_acc2) < 1e-6
    acc_types2 = acc_types_dict(labels2, aux2)
    for c in np.unique(labels2_np):
        m = labels2_np == c
        ref_c = float(np.sum(ref_pred2[m] == labels2_np[m])) / float(np.sum(m))
        assert abs(acc_types2['accuracy_{}'.format(int(c))] - ref_c) < 1e-6

    # --- class-major fast path (skips the wrapper transpose HBM pass) ---
    res2cm, _ = single_particle_loss(logits2.T, labels2, tile_rows=2048, class_major=True)
    assert np.allclose(float(res2cm['loss']), float(res2['loss']), rtol=1e-6, atol=1e-6)
    assert abs(float(res2cm['accuracy']) - float(res2['accuracy'])) < 1e-6

    # --- bf16 multi-tile path (RT = 16 per tile -> bf16 (16,128) min-tile satisfied) ---
    N3 = 4500
    logits3 = jax.random.normal(k5, (N3, C), dtype=jnp.float32).astype(jnp.bfloat16)
    labels3 = jax.random.randint(k2, (N3,), 0, C, dtype=jnp.int32)
    res3, aux3 = single_particle_loss(logits3, labels3, tile_rows=2048, return_pred=True)
    jax.block_until_ready(res3['loss'])

    ref_loss3 = _reference_loss(logits3, labels3)
    assert np.allclose(float(res3['loss']), float(ref_loss3), rtol=1e-3, atol=1e-3), \
        (float(res3['loss']), float(ref_loss3))
    ref_pred3 = np.argmax(np.asarray(logits3.astype(jnp.float32)), axis=1)
    assert np.array_equal(np.asarray(aux3['pred']), ref_pred3)

    print("KERNEL_OK")
</pallas_src>

<mosaic_0001>
module attributes {stable_mosaic.version = 11 : i64} {
  func.func @kernel(%arg0: i32, %arg1: memref<5x1x128xf32, #tpu.memory_space<vmem>>, %arg2: memref<1x128xi32, #tpu.memory_space<vmem>>, %arg3: memref<1x8x128xf32, #tpu.memory_space<vmem>>, %arg4: memref<1x128xi32, #tpu.memory_space<vmem>>) attributes {dimension_semantics = [#tpu.dimension_semantics<parallel>], iteration_bounds = array<i64: 1>, scalar_prefetch = 0 : i64, scratch_operands = 0 : i64, tpu.core_type = #tpu.core_type<tc>, window_params = [{transform_indices = @transform_0, window_bounds = array<i64: 5, 1, 128>}, {transform_indices = @transform_1, window_bounds = array<i64: 1, 128>}, {transform_indices = @transform_2, window_bounds = array<i64: 1, 8, 128>}, {transform_indices = @transform_3, window_bounds = array<i64: 1, 128>}]} {
    %c0 = arith.constant 0 : index
    %c0_0 = arith.constant 0 : index
    %0 = vector.load %arg2[%c0, %c0_0] : memref<1x128xi32, #tpu.memory_space<vmem>>, vector<1x128xi32>
    %c0_1 = arith.constant 0 : index
    %c0_2 = arith.constant 0 : index
    %c0_3 = arith.constant 0 : index
    %1 = vector.load %arg1[%c0_1, %c0_2, %c0_3] : memref<5x1x128xf32, #tpu.memory_space<vmem>>, vector<1x1x128xf32>
    %2 = vector.shape_cast %1 : vector<1x1x128xf32> to vector<1x128xf32>
    %c0_i32 = arith.constant 0 : i32
    %3 = vector.broadcast %c0_i32 : i32 to vector<1x128xi32>
    %c1 = arith.constant 1 : index
    %c0_4 = arith.constant 0 : index
    %c0_5 = arith.constant 0 : index
    %4 = vector.load %arg1[%c1, %c0_4, %c0_5] : memref<5x1x128xf32, #tpu.memory_space<vmem>>, vector<1x1x128xf32>
    %5 = vector.shape_cast %4 : vector<1x1x128xf32> to vector<1x128xf32>
    %6 = arith.cmpf ogt, %5, %2 : vector<1x128xf32>
    %7 = arith.select %6, %5, %2 : vector<1x128xi1>, vector<1x128xf32>
    %c1_i32 = arith.constant 1 : i32
    %8 = vector.broadcast %c1_i32 : i32 to vector<1x128xi32>
    %9 = arith.select %6, %8, %3 : vector<1x128xi1>, vector<1x128xi32>
    %c2 = arith.constant 2 : index
    %c0_6 = arith.constant 0 : index
    %c0_7 = arith.constant 0 : index
    %10 = vector.load %arg1[%c2, %c0_6, %c0_7] : memref<5x1x128xf32, #tpu.memory_space<vmem>>, vector<1x1x128xf32>
    %11 = vector.shape_cast %10 : vector<1x1x128xf32> to vector<1x128xf32>
    %12 = arith.cmpf ogt, %11, %7 : vector<1x128xf32>
    %13 = arith.select %12, %11, %7 : vector<1x128xi1>, vector<1x128xf32>
    %c2_i32 = arith.constant 2 : i32
    %14 = vector.broadcast %c2_i32 : i32 to vector<1x128xi32>
    %15 = arith.select %12, %14, %9 : vector<1x128xi1>, vector<1x128xi32>
    %c3 = arith.constant 3 : index
    %c0_8 = arith.constant 0 : index
    %c0_9 = arith.constant 0 : index
    %16 = vector.load %arg1[%c3, %c0_8, %c0_9] : memref<5x1x128xf32, #tpu.memory_space<vmem>>, vector<1x1x128xf32>
    %17 = vector.shape_cast %16 : vector<1x1x128xf32> to vector<1x128xf32>
    %18 = arith.cmpf ogt, %17, %13 : vector<1x128xf32>
    %19 = arith.select %18, %17, %13 : vector<1x128xi1>, vector<1x128xf32>
    %c3_i32 = arith.constant 3 : i32
    %20 = vector.broadcast %c3_i32 : i32 to vector<1x128xi32>
    %21 = arith.select %18, %20, %15 : vector<1x128xi1>, vector<1x128xi32>
    %c4 = arith.constant 4 : index
    %c0_10 = arith.constant 0 : index
    %c0_11 = arith.constant 0 : index
    %22 = vector.load %arg1[%c4, %c0_10, %c0_11] : memref<5x1x128xf32, #tpu.memory_space<vmem>>, vector<1x1x128xf32>
    %23 = vector.shape_cast %22 : vector<1x1x128xf32> to vector<1x128xf32>
    %24 = arith.cmpf ogt, %23, %19 : vector<1x128xf32>
    %25 = arith.select %24, %23, %19 : vector<1x128xi1>, vector<1x128xf32>
    %c4_i32 = arith.constant 4 : i32
    %26 = vector.broadcast %c4_i32 : i32 to vector<1x128xi32>
    %27 = arith.select %24, %26, %21 : vector<1x128xi1>, vector<1x128xi32>
    %cst = arith.constant 0.000000e+00 : f32
    %28 = vector.broadcast %cst : f32 to vector<1x128xf32>
    %cst_12 = arith.constant 0.000000e+00 : f32
    %29 = vector.broadcast %cst_12 : f32 to vector<1x128xf32>
    %c0_13 = arith.constant 0 : index
    %c0_14 = arith.constant 0 : index
    %c0_15 = arith.constant 0 : index
    %30 = vector.load %arg1[%c0_13, %c0_14, %c0_15] : memref<5x1x128xf32, #tpu.memory_space<vmem>>, vector<1x1x128xf32>
    %31 = vector.shape_cast %30 : vector<1x1x128xf32> to vector<1x128xf32>
    %32 = arith.subf %31, %25 : vector<1x128xf32>
    %33 = math.exp %32 : vector<1x128xf32>
    %34 = arith.addf %28, %33 : vector<1x128xf32>
    %c0_i32_16 = arith.constant 0 : i32
    %35 = vector.broadcast %c0_i32_16 : i32 to vector<1x128xi32>
    %36 = arith.cmpi eq, %0, %35 : vector<1x128xi32>
    %cst_17 = arith.constant 0.000000e+00 : f32
    %37 = vector.broadcast %cst_17 : f32 to vector<1x128xf32>
    %38 = arith.select %36, %32, %37 : vector<1x128xi1>, vector<1x128xf32>
    %39 = arith.addf %29, %38 : vector<1x128xf32>
    %c1_18 = arith.constant 1 : index
    %c0_19 = arith.constant 0 : index
    %c0_20 = arith.constant 0 : index
    %40 = vector.load %arg1[%c1_18, %c0_19, %c0_20] : memref<5x1x128xf32, #tpu.memory_space<vmem>>, vector<1x1x128xf32>
    %41 = vector.shape_cast %40 : vector<1x1x128xf32> to vector<1x128xf32>
    %42 = arith.subf %41, %25 : vector<1x128xf32>
    %43 = math.exp %42 : vector<1x128xf32>
    %44 = arith.addf %34, %43 : vector<1x128xf32>
    %c1_i32_21 = arith.constant 1 : i32
    %45 = vector.broadcast %c1_i32_21 : i32 to vector<1x128xi32>
    %46 = arith.cmpi eq, %0, %45 : vector<1x128xi32>
    %cst_22 = arith.constant 0.000000e+00 : f32
    %47 = vector.broadcast %cst_22 : f32 to vector<1x128xf32>
    %48 = arith.select %46, %42, %47 : vector<1x128xi1>, vector<1x128xf32>
    %49 = arith.addf %39, %48 : vector<1x128xf32>
    %c2_23 = arith.constant 2 : index
    %c0_24 = arith.constant 0 : index
    %c0_25 = arith.constant 0 : index
    %50 = vector.load %arg1[%c2_23, %c0_24, %c0_25] : memref<5x1x128xf32, #tpu.memory_space<vmem>>, vector<1x1x128xf32>
    %51 = vector.shape_cast %50 : vector<1x1x128xf32> to vector<1x128xf32>
    %52 = arith.subf %51, %25 : vector<1x128xf32>
    %53 = math.exp %52 : vector<1x128xf32>
    %54 = arith.addf %44, %53 : vector<1x128xf32>
    %c2_i32_26 = arith.constant 2 : i32
    %55 = vector.broadcast %c2_i32_26 : i32 to vector<1x128xi32>
    %56 = arith.cmpi eq, %0, %55 : vector<1x128xi32>
    %cst_27 = arith.constant 0.000000e+00 : f32
    %57 = vector.broadcast %cst_27 : f32 to vector<1x128xf32>
    %58 = arith.select %56, %52, %57 : vector<1x128xi1>, vector<1x128xf32>
    %59 = arith.addf %49, %58 : vector<1x128xf32>
    %c3_28 = arith.constant 3 : index
    %c0_29 = arith.constant 0 : index
    %c0_30 = arith.constant 0 : index
    %60 = vector.load %arg1[%c3_28, %c0_29, %c0_30] : memref<5x1x128xf32, #tpu.memory_space<vmem>>, vector<1x1x128xf32>
    %61 = vector.shape_cast %60 : vector<1x1x128xf32> to vector<1x128xf32>
    %62 = arith.subf %61, %25 : vector<1x128xf32>
    %63 = math.exp %62 : vector<1x128xf32>
    %64 = arith.addf %54, %63 : vector<1x128xf32>
    %c3_i32_31 = arith.constant 3 : i32
    %65 = vector.broadcast %c3_i32_31 : i32 to vector<1x128xi32>
    %66 = arith.cmpi eq, %0, %65 : vector<1x128xi32>
    %cst_32 = arith.constant 0.000000e+00 : f32
    %67 = vector.broadcast %cst_32 : f32 to vector<1x128xf32>
    %68 = arith.select %66, %62, %67 : vector<1x128xi1>, vector<1x128xf32>
    %69 = arith.addf %59, %68 : vector<1x128xf32>
    %c4_33 = arith.constant 4 : index
    %c0_34 = arith.constant 0 : index
    %c0_35 = arith.constant 0 : index
    %70 = vector.load %arg1[%c4_33, %c0_34, %c0_35] : memref<5x1x128xf32, #tpu.memory_space<vmem>>, vector<1x1x128xf32>
    %71 = vector.shape_cast %70 : vector<1x1x128xf32> to vector<1x128xf32>
    %72 = arith.subf %71, %25 : vector<1x128xf32>
    %73 = math.exp %72 : vector<1x128xf32>
    %74 = arith.addf %64, %73 : vector<1x128xf32>
    %c4_i32_36 = arith.constant 4 : i32
    %75 = vector.broadcast %c4_i32_36 : i32 to vector<1x128xi32>
    %76 = arith.cmpi eq, %0, %75 : vector<1x128xi32>
    %cst_37 = arith.constant 0.000000e+00 : f32
    %77 = vector.broadcast %cst_37 : f32 to vector<1x128xf32>
    %78 = arith.select %76, %72, %77 : vector<1x128xi1>, vector<1x128xf32>
    %79 = arith.addf %69, %78 : vector<1x128xf32>
    %80 = math.log %74 : vector<1x128xf32>
    %c-1_i32 = arith.constant -1 : i32
    %81 = vector.broadcast %c-1_i32 : i32 to vector<1x128xi32>
    %82 = arith.cmpi ne, %0, %81 : vector<1x128xi32>
    %83 = arith.subf %80, %79 : vector<1x128xf32>
    %cst_38 = arith.constant 0.000000e+00 : f32
    %84 = vector.broadcast %cst_38 : f32 to vector<1x128xf32>
    %85 = arith.select %82, %83, %84 : vector<1x128xi1>, vector<1x128xf32>
    %c0_39 = arith.constant 0 : index
    %c0_40 = arith.constant 0 : index
    %86 = vector.load %arg4[%c0_39, %c0_40] : memref<1x128xi32, #tpu.memory_space<vmem>>, vector<1x128xi32>
    tpu.vector_store %arg4[%c0_39, %c0_40], %27 {strides = array<i32>} : memref<1x128xi32, #tpu.memory_space<vmem>>, vector<1x128xi32>,
    %87 = vector.shape_cast %85 : vector<1x128xf32> to vector<1x1x128xf32>
    %cst_41 = arith.constant dense<0.000000e+00> : vector<1xf32>
    %88 = vector.multi_reduction <add>, %87, %cst_41 [1, 2] : vector<1x1x128xf32> to vector<1xf32>
    %89 = vector.shape_cast %88 : vector<1xf32> to vector<1x1x1xf32>
    %90 = vector.extract %89[0, 0, 0] : f32 from vector<1x1x1xf32>
    %91 = arith.extui %82 : vector<1x128xi1> to vector<1x128xi32>
    %92 = arith.sitofp %91 : vector<1x128xi32> to vector<1x128xf32>
    %93 = vector.shape_cast %92 : vector<1x128xf32> to vector<1x1x128xf32>
    %cst_42 = arith.constant dense<0.000000e+00> : vector<1xf32>
    %94 = vector.multi_reduction <add>, %93, %cst_42 [1, 2] : vector<1x1x128xf32> to vector<1xf32>
    %95 = vector.shape_cast %94 : vector<1xf32> to vector<1x1x1xf32>
    %96 = vector.extract %95[0, 0, 0] : f32 from vector<1x1x1xf32>
    %97 = arith.cmpi eq, %27, %0 : vector<1x128xi32>
    %98 = arith.extui %97 : vector<1x128xi1> to vector<1x128xi32>
    %99 = arith.sitofp %98 : vector<1x128xi32> to vector<1x128xf32>
    %100 = vector.shape_cast %99 : vector<1x128xf32> to vector<1x1x128xf32>
    %cst_43 = arith.constant dense<0.000000e+00> : vector<1xf32>
    %101 = vector.multi_reduction <add>, %100, %cst_43 [1, 2] : vector<1x1x128xf32> to vector<1xf32>
    %102 = vector.shape_cast %101 : vector<1xf32> to vector<1x1x1xf32>
    %103 = vector.extract %102[0, 0, 0] : f32 from vector<1x1x1xf32>
    %104 = tpu.iota {dimensions = array<i32: 0>} : vector<8x128xi32>
    %105 = tpu.iota {dimensions = array<i32: 1>} : vector<8x128xi32>
    %c0_i32_44 = arith.constant 0 : i32
    %106 = vector.broadcast %c0_i32_44 : i32 to vector<8x128xi32>
    %107 = arith.cmpi eq, %104, %106 : vector<8x128xi32>
    %c0_i32_45 = arith.constant 0 : i32
    %108 = vector.broadcast %c0_i32_45 : i32 to vector<8x128xi32>
    %109 = arith.cmpi eq, %105, %108 : vector<8x128xi32>
    %110 = arith.andi %107, %109 : vector<8x128xi1>
    %c0_i32_46 = arith.constant 0 : i32
    %111 = vector.broadcast %c0_i32_46 : i32 to vector<8x128xi32>
    %112 = arith.cmpi eq, %104, %111 : vector<8x128xi32>
    %c1_i32_47 = arith.constant 1 : i32
    %113 = vector.broadcast %c1_i32_47 : i32 to vector<8x128xi32>
    %114 = arith.cmpi eq, %105, %113 : vector<8x128xi32>
    %115 = arith.andi %112, %114 : vector<8x128xi1>
    %c0_i32_48 = arith.constant 0 : i32
    %116 = vector.broadcast %c0_i32_48 : i32 to vector<8x128xi32>
    %117 = arith.cmpi eq, %104, %116 : vector<8x128xi32>
    %c2_i32_49 = arith.constant 2 : i32
    %118 = vector.broadcast %c2_i32_49 : i32 to vector<8x128xi32>
    %119 = arith.cmpi eq, %105, %118 : vector<8x128xi32>
    %120 = arith.andi %117, %119 : vector<8x128xi1>
    %cst_50 = arith.constant 0.000000e+00 : f32
    %121 = vector.broadcast %cst_50 : f32 to vector<8x128xf32>
    %122 = vector.broadcast %103 : f32 to vector<8x128xf32>
    %123 = arith.select %120, %122, %121 : vector<8x128xi1>, vector<8x128xf32>
    %124 = vector.broadcast %96 : f32 to vector<8x128xf32>
    %125 = arith.select %115, %124, %123 : vector<8x128xi1>, vector<8x128xf32>
    %126 = vector.broadcast %90 : f32 to vector<8x128xf32>
    %127 = arith.select %110, %126, %125 : vector<8x128xi1>, vector<8x128xf32>
    %c0_i32_51 = arith.constant 0 : i32
    %128 = vector.broadcast %c0_i32_51 : i32 to vector<1x128xi32>
    %129 = arith.cmpi eq, %0, %128 : vector<1x128xi32>
    %130 = arith.extui %129 : vector<1x128xi1> to vector<1x128xi32>
    %131 = arith.sitofp %130 : vector<1x128xi32> to vector<1x128xf32>
    %132 = vector.shape_cast %131 : vector<1x128xf32> to vector<1x1x128xf32>
    %cst_52 = arith.constant dense<0.000000e+00> : vector<1xf32>
    %133 = vector.multi_reduction <add>, %132, %cst_52 [1, 2] : vector<1x1x128xf32> to vector<1xf32>
    %134 = vector.shape_cast %133 : vector<1xf32> to vector<1x1x1xf32>
    %135 = vector.extract %134[0, 0, 0] : f32 from vector<1x1x1xf32>
    %c0_i32_53 = arith.constant 0 : i32
    %136 = vector.broadcast %c0_i32_53 : i32 to vector<1x128xi32>
    %137 = arith.cmpi eq, %27, %136 : vector<1x128xi32>
    %138 = arith.andi %129, %137 : vector<1x128xi1>
    %139 = arith.extui %138 : vector<1x128xi1> to vector<1x128xi32>
    %140 = arith.sitofp %139 : vector<1x128xi32> to vector<1x128xf32>
    %141 = vector.shape_cast %140 : vector<1x128xf32> to vector<1x1x128xf32>
    %cst_54 = arith.constant dense<0.000000e+00> : vector<1xf32>
    %142 = vector.multi_reduction <add>, %141, %cst_54 [1, 2] : vector<1x1x128xf32> to vector<1xf32>
    %143 = vector.shape_cast %142 : vector<1xf32> to vector<1x1x1xf32>
    %144 = vector.extract %143[0, 0, 0] : f32 from vector<1x1x1xf32>
    %c1_i32_55 = arith.constant 1 : i32
    %145 = vector.broadcast %c1_i32_55 : i32 to vector<8x128xi32>
    %146 = arith.cmpi eq, %104, %145 : vector<8x128xi32>
    %c0_i32_56 = arith.constant 0 : i32
    %147 = vector.broadcast %c0_i32_56 : i32 to vector<8x128xi32>
    %148 = arith.cmpi eq, %105, %147 : vector<8x128xi32>
    %149 = arith.andi %146, %148 : vector<8x128xi1>
    %150 = vector.broadcast %135 : f32 to vector<8x128xf32>
    %151 = arith.select %149, %150, %127 : vector<8x128xi1>, vector<8x128xf32>
    %c2_i32_57 = arith.constant 2 : i32
    %152 = vector.broadcast %c2_i32_57 : i32 to vector<8x128xi32>
    %153 = arith.cmpi eq, %104, %152 : vector<8x128xi32>
    %c0_i32_58 = arith.constant 0 : i32
    %154 = vector.broadcast %c0_i32_58 : i32 to vector<8x128xi32>
    %155 = arith.cmpi eq, %105, %154 : vector<8x128xi32>
    %156 = arith.andi %153, %155 : vector<8x128xi1>
    %157 = vector.broadcast %144 : f32 to vector<8x128xf32>
    %158 = arith.select %156, %157, %151 : vector<8x128xi1>, vector<8x128xf32>
    %c1_i32_59 = arith.constant 1 : i32
    %159 = vector.broadcast %c1_i32_59 : i32 to vector<1x128xi32>
    %160 = arith.cmpi eq, %0, %159 : vector<1x128xi32>
    %161 = arith.extui %160 : vector<1x128xi1> to vector<1x128xi32>
    %162 = arith.sitofp %161 : vector<1x128xi32> to vector<1x128xf32>
    %163 = vector.shape_cast %162 : vector<1x128xf32> to vector<1x1x128xf32>
    %cst_60 = arith.constant dense<0.000000e+00> : vector<1xf32>
    %164 = vector.multi_reduction <add>, %163, %cst_60 [1, 2] : vector<1x1x128xf32> to vector<1xf32>
    %165 = vector.shape_cast %164 : vector<1xf32> to vector<1x1x1xf32>
    %166 = vector.extract %165[0, 0, 0] : f32 from vector<1x1x1xf32>
    %c1_i32_61 = arith.constant 1 : i32
    %167 = vector.broadcast %c1_i32_61 : i32 to vector<1x128xi32>
    %168 = arith.cmpi eq, %27, %167 : vector<1x128xi32>
    %169 = arith.andi %160, %168 : vector<1x128xi1>
    %170 = arith.extui %169 : vector<1x128xi1> to vector<1x128xi32>
    %171 = arith.sitofp %170 : vector<1x128xi32> to vector<1x128xf32>
    %172 = vector.shape_cast %171 : vector<1x128xf32> to vector<1x1x128xf32>
    %cst_62 = arith.constant dense<0.000000e+00> : vector<1xf32>
    %173 = vector.multi_reduction <add>, %172, %cst_62 [1, 2] : vector<1x1x128xf32> to vector<1xf32>
    %174 = vector.shape_cast %173 : vector<1xf32> to vector<1x1x1xf32>
    %175 = vector.extract %174[0, 0, 0] : f32 from vector<1x1x1xf32>
    %c1_i32_63 = arith.constant 1 : i32
    %176 = vector.broadcast %c1_i32_63 : i32 to vector<8x128xi32>
    %177 = arith.cmpi eq, %104, %176 : vector<8x128xi32>
    %c1_i32_64 = arith.constant 1 : i32
    %178 = vector.broadcast %c1_i32_64 : i32 to vector<8x128xi32>
    %179 = arith.cmpi eq, %105, %178 : vector<8x128xi32>
    %180 = arith.andi %177, %179 : vector<8x128xi1>
    %181 = vector.broadcast %166 : f32 to vector<8x128xf32>
    %182 = arith.select %180, %181, %158 : vector<8x128xi1>, vector<8x128xf32>
    %c2_i32_65 = arith.constant 2 : i32
    %183 = vector.broadcast %c2_i32_65 : i32 to vector<8x128xi32>
    %184 = arith.cmpi eq, %104, %183 : vector<8x128xi32>
    %c1_i32_66 = arith.constant 1 : i32
    %185 = vector.broadcast %c1_i32_66 : i32 to vector<8x128xi32>
    %186 = arith.cmpi eq, %105, %185 : vector<8x128xi32>
    %187 = arith.andi %184, %186 : vector<8x128xi1>
    %188 = vector.broadcast %175 : f32 to vector<8x128xf32>
    %189 = arith.select %187, %188, %182 : vector<8x128xi1>, vector<8x128xf32>
    %c2_i32_67 = arith.constant 2 : i32
    %190 = vector.broadcast %c2_i32_67 : i32 to vector<1x128xi32>
    %191 = arith.cmpi eq, %0, %190 : vector<1x128xi32>
    %192 = arith.extui %191 : vector<1x128xi1> to vector<1x128xi32>
    %193 = arith.sitofp %192 : vector<1x128xi32> to vector<1x128xf32>
    %194 = vector.shape_cast %193 : vector<1x128xf32> to vector<1x1x128xf32>
    %cst_68 = arith.constant dense<0.000000e+00> : vector<1xf32>
    %195 = vector.multi_reduction <add>, %194, %cst_68 [1, 2] : vector<1x1x128xf32> to vector<1xf32>
    %196 = vector.shape_cast %195 : vector<1xf32> to vector<1x1x1xf32>
    %197 = vector.extract %196[0, 0, 0] : f32 from vector<1x1x1xf32>
    %c2_i32_69 = arith.constant 2 : i32
    %198 = vector.broadcast %c2_i32_69 : i32 to vector<1x128xi32>
    %199 = arith.cmpi eq, %27, %198 : vector<1x128xi32>
    %200 = arith.andi %191, %199 : vector<1x128xi1>
    %201 = arith.extui %200 : vector<1x128xi1> to vector<1x128xi32>
    %202 = arith.sitofp %201 : vector<1x128xi32> to vector<1x128xf32>
    %203 = vector.shape_cast %202 : vector<1x128xf32> to vector<1x1x128xf32>
    %cst_70 = arith.constant dense<0.000000e+00> : vector<1xf32>
    %204 = vector.multi_reduction <add>, %203, %cst_70 [1, 2] : vector<1x1x128xf32> to vector<1xf32>
    %205 = vector.shape_cast %204 : vector<1xf32> to vector<1x1x1xf32>
    %206 = vector.extract %205[0, 0, 0] : f32 from vector<1x1x1xf32>
    %c1_i32_71 = arith.constant 1 : i32
    %207 = vector.broadcast %c1_i32_71 : i32 to vector<8x128xi32>
    %208 = arith.cmpi eq, %104, %207 : vector<8x128xi32>
    %c2_i32_72 = arith.constant 2 : i32
    %209 = vector.broadcast %c2_i32_72 : i32 to vector<8x128xi32>
    %210 = arith.cmpi eq, %105, %209 : vector<8x128xi32>
    %211 = arith.andi %208, %210 : vector<8x128xi1>
    %212 = vector.broadcast %197 : f32 to vector<8x128xf32>
    %213 = arith.select %211, %212, %189 : vector<8x128xi1>, vector<8x128xf32>
    %c2_i32_73 = arith.constant 2 : i32
    %214 = vector.broadcast %c2_i32_73 : i32 to vector<8x128xi32>
    %215 = arith.cmpi eq, %104, %214 : vector<8x128xi32>
    %c2_i32_74 = arith.constant 2 : i32
    %216 = vector.broadcast %c2_i32_74 : i32 to vector<8x128xi32>
    %217 = arith.cmpi eq, %105, %216 : vector<8x128xi32>
    %218 = arith.andi %215, %217 : vector<8x128xi1>
    %219 = vector.broadcast %206 : f32 to vector<8x128xf32>
    %220 = arith.select %218, %219, %213 : vector<8x128xi1>, vector<8x128xf32>
    %c3_i32_75 = arith.constant 3 : i32
    %221 = vector.broadcast %c3_i32_75 : i32 to vector<1x128xi32>
    %222 = arith.cmpi eq, %0, %221 : vector<1x128xi32>
    %223 = arith.extui %222 : vector<1x128xi1> to vector<1x128xi32>
    %224 = arith.sitofp %223 : vector<1x128xi32> to vector<1x128xf32>
    %225 = vector.shape_cast %224 : vector<1x128xf32> to vector<1x1x128xf32>
    %cst_76 = arith.constant dense<0.000000e+00> : vector<1xf32>
    %226 = vector.multi_reduction <add>, %225, %cst_76 [1, 2] : vector<1x1x128xf32> to vector<1xf32>
    %227 = vector.shape_cast %226 : vector<1xf32> to vector<1x1x1xf32>
    %228 = vector.extract %227[0, 0, 0] : f32 from vector<1x1x1xf32>
    %c3_i32_77 = arith.constant 3 : i32
    %229 = vector.broadcast %c3_i32_77 : i32 to vector<1x128xi32>
    %230 = arith.cmpi eq, %27, %229 : vector<1x128xi32>
    %231 = arith.andi %222, %230 : vector<1x128xi1>
    %232 = arith.extui %231 : vector<1x128xi1> to vector<1x128xi32>
    %233 = arith.sitofp %232 : vector<1x128xi32> to vector<1x128xf32>
    %234 = vector.shape_cast %233 : vector<1x128xf32> to vector<1x1x128xf32>
    %cst_78 = arith.constant dense<0.000000e+00> : vector<1xf32>
    %235 = vector.multi_reduction <add>, %234, %cst_78 [1, 2] : vector<1x1x128xf32> to vector<1xf32>
    %236 = vector.shape_cast %235 : vector<1xf32> to vector<1x1x1xf32>
    %237 = vector.extract %236[0, 0, 0] : f32 from vector<1x1x1xf32>
    %c1_i32_79 = arith.constant 1 : i32
    %238 = vector.broadcast %c1_i32_79 : i32 to vector<8x128xi32>
    %239 = arith.cmpi eq, %104, %238 : vector<8x128xi32>
    %c3_i32_80 = arith.constant 3 : i32
    %240 = vector.broadcast %c3_i32_80 : i32 to vector<8x128xi32>
    %241 = arith.cmpi eq, %105, %240 : vector<8x128xi32>
    %242 = arith.andi %239, %241 : vector<8x128xi1>
    %243 = vector.broadcast %228 : f32 to vector<8x128xf32>
    %244 = arith.select %242, %243, %220 : vector<8x128xi1>, vector<8x128xf32>
    %c2_i32_81 = arith.constant 2 : i32
    %245 = vector.broadcast %c2_i32_81 : i32 to vector<8x128xi32>
    %246 = arith.cmpi eq, %104, %245 : vector<8x128xi32>
    %c3_i32_82 = arith.constant 3 : i32
    %247 = vector.broadcast %c3_i32_82 : i32 to vector<8x128xi32>
    %248 = arith.cmpi eq, %105, %247 : vector<8x128xi32>
    %249 = arith.andi %246, %248 : vector<8x128xi1>
    %250 = vector.broadcast %237 : f32 to vector<8x128xf32>
    %251 = arith.select %249, %250, %244 : vector<8x128xi1>, vector<8x128xf32>
    %c4_i32_83 = arith.constant 4 : i32
    %252 = vector.broadcast %c4_i32_83 : i32 to vector<1x128xi32>
    %253 = arith.cmpi eq, %0, %252 : vector<1x128xi32>
    %254 = arith.extui %253 : vector<1x128xi1> to vector<1x128xi32>
    %255 = arith.sitofp %254 : vector<1x128xi32> to vector<1x128xf32>
    %256 = vector.shape_cast %255 : vector<1x128xf32> to vector<1x1x128xf32>
    %cst_84 = arith.constant dense<0.000000e+00> : vector<1xf32>
    %257 = vector.multi_reduction <add>, %256, %cst_84 [1, 2] : vector<1x1x128xf32> to vector<1xf32>
    %258 = vector.shape_cast %257 : vector<1xf32> to vector<1x1x1xf32>
    %259 = vector.extract %258[0, 0, 0] : f32 from vector<1x1x1xf32>
    %c4_i32_85 = arith.constant 4 : i32
    %260 = vector.broadcast %c4_i32_85 : i32 to vector<1x128xi32>
    %261 = arith.cmpi eq, %27, %260 : vector<1x128xi32>
    %262 = arith.andi %253, %261 : vector<1x128xi1>
    %263 = arith.extui %262 : vector<1x128xi1> to vector<1x128xi32>
    %264 = arith.sitofp %263 : vector<1x128xi32> to vector<1x128xf32>
    %265 = vector.shape_cast %264 : vector<1x128xf32> to vector<1x1x128xf32>
    %cst_86 = arith.constant dense<0.000000e+00> : vector<1xf32>
    %266 = vector.multi_reduction <add>, %265, %cst_86 [1, 2] : vector<1x1x128xf32> to vector<1xf32>
    %267 = vector.shape_cast %266 : vector<1xf32> to vector<1x1x1xf32>
    %268 = vector.extract %267[0, 0, 0] : f32 from vector<1x1x1xf32>
    %c1_i32_87 = arith.constant 1 : i32
    %269 = vector.broadcast %c1_i32_87 : i32 to vector<8x128xi32>
    %270 = arith.cmpi eq, %104, %269 : vector<8x128xi32>
    %c4_i32_88 = arith.constant 4 : i32
    %271 = vector.broadcast %c4_i32_88 : i32 to vector<8x128xi32>
    %272 = arith.cmpi eq, %105, %271 : vector<8x128xi32>
    %273 = arith.andi %270, %272 : vector<8x128xi1>
    %274 = vector.broadcast %259 : f32 to vector<8x128xf32>
    %275 = arith.select %273, %274, %251 : vector<8x128xi1>, vector<8x128xf32>
    %c2_i32_89 = arith.constant 2 : i32
    %276 = vector.broadcast %c2_i32_89 : i32 to vector<8x128xi32>
    %277 = arith.cmpi eq, %104, %276 : vector<8x128xi32>
    %c4_i32_90 = arith.constant 4 : i32
    %278 = vector.broadcast %c4_i32_90 : i32 to vector<8x128xi32>
    %279 = arith.cmpi eq, %105, %278 : vector<8x128xi32>
    %280 = arith.andi %277, %279 : vector<8x128xi1>
    %281 = vector.broadcast %268 : f32 to vector<8x128xf32>
    %282 = arith.select %280, %281, %275 : vector<8x128xi1>, vector<8x128xf32>
    %283 = vector.shape_cast %282 : vector<8x128xf32> to vector<1x8x128xf32>
    %c0_91 = arith.constant 0 : index
    %c0_92 = arith.constant 0 : index
    %c0_93 = arith.constant 0 : index
    %284 = vector.load %arg3[%c0_91, %c0_92, %c0_93] : memref<1x8x128xf32, #tpu.memory_space<vmem>>, vector<1x8x128xf32>
    tpu.vector_store %arg3[%c0_91, %c0_92, %c0_93], %283 {strides = array<i32>} : memref<1x8x128xf32, #tpu.memory_space<vmem>>, vector<1x8x128xf32>,
    return
  }
  func.func @transform_0(%arg0: i32) -> (i32, i32, i32) {
    %c0_i32 = arith.constant 0 : i32
    %c0_i32_0 = arith.constant 0 : i32
    %c0_i32_1 = arith.constant 0 : i32
    return %c0_i32, %arg0, %c0_i32_0 : i32, i32, i32
  }
  func.func @transform_1(%arg0: i32) -> (i32, i32) {
    %c0_i32 = arith.constant 0 : i32
    %c0_i32_0 = arith.constant 0 : i32
    return %arg0, %c0_i32 : i32, i32
  }
  func.func @transform_2(%arg0: i32) -> (i32, i32, i32) {
    %c0_i32 = arith.constant 0 : i32
    %c0_i32_0 = arith.constant 0 : i32
    %c0_i32_1 = arith.constant 0 : i32
    return %arg0, %c0_i32, %c0_i32_0 : i32, i32, i32
  }
  func.func @transform_3(%arg0: i32) -> (i32, i32) {
    %c0_i32 = arith.constant 0 : i32
    %c0_i32_0 = arith.constant 0 : i32
    return %arg0, %c0_i32 : i32, i32
  }
}

</mosaic_0001>

<llo_original>
// kernel: tpu_custom_call.1
$region0: #{tpu_custom_call.1}
  #allocation0 [shape = 'u32[]', space=smem, size = 0x4, offset = 0x4, fixed_abs, tag = 'smem constant byte address 0x4 - core index']
  #allocation1 [shape = 'u32[72,128]{1,0:T(1,128)}', space=vmem, size = 0x9000, scoped, tag = 'internal scratch']
  %s0 = inlined_call_operand.hbm [shape: f32[5,1,128], index: 0, kind: input, shape index: {}]
  %s1 = inlined_call_operand.hbm [shape: s32[1,128], index: 1, kind: input, shape index: {}]
  %s2 = inlined_call_operand.hbm [shape: f32[1,8,128], index: 2, kind: output, shape index: {0}]
  %s3 = inlined_call_operand.hbm [shape: s32[1,128], index: 3, kind: output, shape index: {1}]
  %4 = xla_tuple %s2, %s3
  %s5 = sld [smem:[#allocation0]]
  $region34: #{tpu_custom_call.1} parent=0
    _
  %s7 = ssub.s32 1, %s5
  %s8 = scalar_select 0, %s7, %s5
  $region1: #{tpu_custom_call.1} parent=0
    #allocation2 [shape = 'u8[2560]{0}', space=vmem, size = 0xc00, scoped, tag = 'input window, operand 0, single buffered']
    #allocation3 [shape = 's32[1]{0}', space=sflag, size = 0x4, scoped, tag = 'scoped memory for tpu_custom_call.1']
    #allocation4 [shape = 's32[1]{0}', space=sflag, size = 0x4, scoped, tag = 'scoped memory for tpu_custom_call.1']
    #allocation5 [shape = 'u8[512]{0}', space=vmem, size = 0x400, scoped, tag = 'input window, operand 1, single buffered']
    #allocation6 [shape = 's32[1]{0}', space=sflag, size = 0x4, scoped, tag = 'scoped memory for tpu_custom_call.1']
    #allocation7 [shape = 'u8[4096]{0}', space=vmem, size = 0x1000, scoped, tag = 'output window, operand 0, single buffered']
    #allocation8 [shape = 'u8[512]{0}', space=vmem, size = 0x400, scoped, tag = 'output window, operand 1, single buffered']
    #allocation9 [shape = 's32[1]{0}', space=sflag, size = 0x4, scoped, tag = 'scoped memory for tpu_custom_call.1']
    %9 = vsyncpa [#allocation3], 0
    %10 = vsyncpa [#allocation6], 0
    %11 = vsyncpa [#allocation4], 0
    %12 = vsyncpa [#allocation9], 0
    // Predicated region
    $region2: #{tpu_custom_call.1} parent=1 // pred_check
      _
    $region3: #{tpu_custom_call.1} parent=1 // pred_check_branch
      %14 = sbr.rel (0) target = $region5
    $region4: #{tpu_custom_call.1} parent=1 // pred_region
      %16 = vsyncadd [#allocation3], 0
      %s17 = sshll.u32 %s0, 4
      %s18 = int_to_ptr.hbm [resolvable:$true] %s17
      %s19 = sshll.u32 [#allocation2], 4
      %s20 = int_to_ptr.vmem [resolvable:$true] %s19
      %25 = dma.hbm_to_vmem [thread:$0]  %s18, 80, %s20, [#allocation3], 16, 16, 1
    $region5: #{tpu_custom_call.1} parent=1 // pred_fallthru
      _
    // Predicated region
    $region6: #{tpu_custom_call.1} parent=1 // pred_check
      _
    $region7: #{tpu_custom_call.1} parent=1 // pred_check_branch
      %27 = sbr.rel (0) target = $region9
    $region8: #{tpu_custom_call.1} parent=1 // pred_region
      %29 = vsyncadd [#allocation6], 0
      %s31 = sshll.u32 %s1, 4
      %s32 = int_to_ptr.hbm [resolvable:$true] %s31
      %s33 = sshll.u32 [#allocation5], 4
      %s34 = int_to_ptr.vmem [resolvable:$true] %s33
      %36 = dma.hbm_to_vmem [thread:$0]  %s32, 16, %s34, [#allocation6]
    $region9: #{tpu_custom_call.1} parent=1 // pred_fallthru
      _
    // Predicated region
    $region10: #{tpu_custom_call.1} parent=1 // pred_check
      _
    $region11: #{tpu_custom_call.1} parent=1 // pred_check_branch
      %38 = sbr.rel (0) target = $region13
    $region12: #{tpu_custom_call.1} parent=1 // pred_region
      %40 = dma.done [#allocation3], 80
    $region13: #{tpu_custom_call.1} parent=1 // pred_fallthru
      _
    // Predicated region
    $region14: #{tpu_custom_call.1} parent=1 // pred_check
      _
    $region15: #{tpu_custom_call.1} parent=1 // pred_check_branch
      %42 = sbr.rel (0) target = $region17
    $region16: #{tpu_custom_call.1} parent=1 // pred_region
      %44 = dma.done [#allocation6], 16
    $region17: #{tpu_custom_call.1} parent=1 // pred_fallthru
      _
    %v45 = vld [vmem:[#allocation5] sm:$0x1]
    %v46 = vld [vmem:[#allocation2] sm:$0x1]
    %s47 = scalar_lea.vmem [#allocation2], 1
    %v48 = vld [vmem:[%s47] sm:$0x1]
    %vm49 = vcmp.gt.f32.partialorder %v48, %v46
    %v50 = vsel %vm49, %v48, %v46
    %v51 = vsel %vm49, 1, 0
    %s52 = scalar_lea.vmem [#allocation2], 2
    %v53 = vld [vmem:[%s52] sm:$0x1]
    %vm54 = vcmp.gt.f32.partialorder %v53, %v50
    %v55 = vsel %vm54, %v53, %v50
    %v56 = vsel %vm54, 2, %v51
    %s57 = scalar_lea.vmem [#allocation2], 3
    %v58 = vld [vmem:[%s57] sm:$0x1]
    %vm59 = vcmp.gt.f32.partialorder %v58, %v55
    %v60 = vsel %vm59, %v58, %v55
    %v61 = vsel %vm59, 3, %v56
    %s62 = scalar_lea.vmem [#allocation2], 4
    %v63 = vld [vmem:[%s62] sm:$0x1]
    %vm64 = vcmp.gt.f32.partialorder %v63, %v60
    %v65 = vsel %vm64, %v63, %v60
    %v66 = vsel %vm64, 4, %v61
    %v67 = vsub.f32 %v46, %v65
    %v68 = vmul.f32 %v67, 1.442695
    %v69 = vpow.pop %v68
    %v70 = vadd.f32 %v69, 0.0
    %vm71 = vcmp.eq.s32.totalorder %v45, 0
    %v72 = vsel %vm71, %v67, 0.0
    %v73 = vadd.f32 %v72, 0.0
    %v74 = vsub.f32 %v48, %v65
    %v75 = vmul.f32 %v74, 1.442695
    %v76 = vpow.pop %v75
    %v77 = vadd.f32 %v70, %v76
    %vm78 = vcmp.eq.s32.totalorder %v45, 1
    %v79 = vsel %vm78, %v74, 0.0
    %v80 = vadd.f32 %v73, %v79
    %v81 = vsub.f32 %v53, %v65
    %v82 = vmul.f32 %v81, 1.442695
    %v83 = vpow.pop %v82
    %v84 = vadd.f32 %v77, %v83
    %vm85 = vcmp.eq.s32.totalorder %v45, 2
    %v86 = vsel %vm85, %v81, 0.0
    %v87 = vadd.f32 %v80, %v86
    %v88 = vsub.f32 %v58, %v65
    %v89 = vmul.f32 %v88, 1.442695
    %v90 = vpow.pop %v89
    %v91 = vadd.f32 %v84, %v90
    %vm92 = vcmp.eq.s32.totalorder %v45, 3
    %v93 = vsel %vm92, %v88, 0.0
    %v94 = vadd.f32 %v87, %v93
    %v95 = vsub.f32 %v63, %v65
    %v96 = vmul.f32 %v95, 1.442695
    %v97 = vpow.pop %v96
    %v98 = vadd.f32 %v91, %v97
    %vm99 = vcmp.eq.s32.totalorder %v45, 4
    %v100 = vsel %vm99, %v95, 0.0
    %v101 = vadd.f32 %v94, %v100
    %v102 = vlog2.pop %v98
    %v103 = vmul.f32 %v102, 0.6931472
    %vm104 = vcmp.ne.s32.totalorder %v45, 4294967295
    %v105 = vsub.f32 %v103, %v101
    %v106 = vsel %vm104, %v105, 0.0
    %107 = vst [vmem:[#allocation8] sm:$0x1] %v66
    %vm108 = vcmask 1040384
    %v109 = vsel %vm108, %v106, 0.0
    %110 = vadd.xlane.f32.xlu0 %v109
    %v111 = vpop.xlane.xlu0 %110
    %v112 = vrot.slane %v111, 4
    %v113 = vadd.f32 %v111, %v112
    %v114 = vrot.slane %v113, 2
    %v115 = vadd.f32 %v113, %v114
    %v116 = vrot.slane %v115, 1
    %v117 = vadd.f32 %v115, %v116
    %s118 = vtos %v117
    %v119 = vsel %vm104, 1, 0
    %v120 = vcvt.s32.f32 %v119
    %v121 = vsel %vm108, %v120, 0.0
    %122 = vadd.xlane.f32.xlu0 %v121
    %v123 = vpop.xlane.xlu0 %122
    %v124 = vrot.slane %v123, 4
    %v125 = vadd.f32 %v123, %v124
    %v126 = vrot.slane %v125, 2
    %v127 = vadd.f32 %v125, %v126
    %v128 = vrot.slane %v127, 1
    %v129 = vadd.f32 %v127, %v128
    %s130 = vtos %v129
    %vm131 = vcmp.eq.s32.totalorder %v66, %v45
    %v132 = vsel %vm131, 1, 0
    %v133 = vcvt.s32.f32 %v132
    %v134 = vsel %vm108, %v133, 0.0
    %135 = vadd.xlane.f32.xlu0 %v134
    %v136 = vpop.xlane.xlu0 %135
    %v137 = vrot.slane %v136, 4
    %v138 = vadd.f32 %v136, %v137
    %v139 = vrot.slane %v138, 2
    %v140 = vadd.f32 %v138, %v139
    %v141 = vrot.slane %v140, 1
    %v142 = vadd.f32 %v140, %v141
    %s143 = vtos %v142
    %v144 = vlaneseq
    %v145 = vshrl.u32 %v144, 7
    %v146 = vlaneseq
    %v147 = vand.u32 %v146, 127
    %vm148 = vcmp.eq.s32.totalorder %v145, 0
    %vm149 = vcmp.eq.s32.totalorder %v147, 0
    %vm150 = vmand %vm148, %vm149
    %vm151 = vcmp.eq.s32.totalorder %v147, 1
    %vm152 = vmand %vm148, %vm151
    %vm153 = vcmp.eq.s32.totalorder %v147, 2
    %vm154 = vmand %vm148, %vm153
    %v155 = vstv %s143
    %v156 = vsel %vm154, %v155, 0.0
    %v157 = vstv %s130
    %v158 = vsel %vm152, %v157, %v156
    %v159 = vstv %s118
    %v160 = vsel %vm150, %v159, %v158
    %v161 = vsel %vm71, 1, 0
    %v162 = vcvt.s32.f32 %v161
    %v163 = vsel %vm108, %v162, 0.0
    %164 = vadd.xlane.f32.xlu0 %v163
    %v165 = vpop.xlane.xlu0 %164
    %v166 = vrot.slane %v165, 4
    %v167 = vadd.f32 %v165, %v166
    %v168 = vrot.slane %v167, 2
    %v169 = vadd.f32 %v167, %v168
    %v170 = vrot.slane %v169, 1
    %v171 = vadd.f32 %v169, %v170
    %s172 = vtos %v171
    %vm173 = vcmp.eq.s32.totalorder %v66, 0
    %vm174 = vmand %vm71, %vm173
    %v175 = vsel %vm174, 1, 0
    %v176 = vcvt.s32.f32 %v175
    %v177 = vsel %vm108, %v176, 0.0
    %178 = vadd.xlane.f32.xlu0 %v177
    %v179 = vpop.xlane.xlu0 %178
    %v180 = vrot.slane %v179, 4
    %v181 = vadd.f32 %v179, %v180
    %v182 = vrot.slane %v181, 2
    %v183 = vadd.f32 %v181, %v182
    %v184 = vrot.slane %v183, 1
    %v185 = vadd.f32 %v183, %v184
    %s186 = vtos %v185
    %vm187 = vcmp.eq.s32.totalorder %v145, 1
    %vm188 = vmand %vm187, %vm149
    %v189 = vstv %s172
    %v190 = vsel %vm188, %v189, %v160
    %vm191 = vcmp.eq.s32.totalorder %v145, 2
    %vm192 = vmand %vm191, %vm149
    %v193 = vstv %s186
    %v194 = vsel %vm192, %v193, %v190
    %v195 = vsel %vm78, 1, 0
    %v196 = vcvt.s32.f32 %v195
    %v197 = vsel %vm108, %v196, 0.0
    %198 = vadd.xlane.f32.xlu0 %v197
    %v199 = vpop.xlane.xlu0 %198
    %v200 = vrot.slane %v199, 4
    %v201 = vadd.f32 %v199, %v200
    %v202 = vrot.slane %v201, 2
    %v203 = vadd.f32 %v201, %v202
    %v204 = vrot.slane %v203, 1
    %v205 = vadd.f32 %v203, %v204
    %s206 = vtos %v205
    %vm207 = vcmp.eq.s32.totalorder %v66, 1
    %vm208 = vmand %vm78, %vm207
    %v209 = vsel %vm208, 1, 0
    %v210 = vcvt.s32.f32 %v209
    %v211 = vsel %vm108, %v210, 0.0
    %212 = vadd.xlane.f32.xlu0 %v211
    %v213 = vpop.xlane.xlu0 %212
    %v214 = vrot.slane %v213, 4
    %v215 = vadd.f32 %v213, %v214
    %v216 = vrot.slane %v215, 2
    %v217 = vadd.f32 %v215, %v216
    %v218 = vrot.slane %v217, 1
    %v219 = vadd.f32 %v217, %v218
    %s220 = vtos %v219
    %vm221 = vmand %vm187, %vm151
    %v222 = vstv %s206
    %v223 = vsel %vm221, %v222, %v194
    %vm224 = vmand %vm191, %vm151
    %v225 = vstv %s220
    %v226 = vsel %vm224, %v225, %v223
    %v227 = vsel %vm85, 1, 0
    %v228 = vcvt.s32.f32 %v227
    %v229 = vsel %vm108, %v228, 0.0
    %230 = vadd.xlane.f32.xlu0 %v229
    %v231 = vpop.xlane.xlu0 %230
    %v232 = vrot.slane %v231, 4
    %v233 = vadd.f32 %v231, %v232
    %v234 = vrot.slane %v233, 2
    %v235 = vadd.f32 %v233, %v234
    %v236 = vrot.slane %v235, 1
    %v237 = vadd.f32 %v235, %v236
    %s238 = vtos %v237
    %vm239 = vcmp.eq.s32.totalorder %v66, 2
    %vm240 = vmand %vm85, %vm239
    %v241 = vsel %vm240, 1, 0
    %v242 = vcvt.s32.f32 %v241
    %v243 = vsel %vm108, %v242, 0.0
    %244 = vadd.xlane.f32.xlu0 %v243
    %v245 = vpop.xlane.xlu0 %244
    %v246 = vrot.slane %v245, 4
    %v247 = vadd.f32 %v245, %v246
    %v248 = vrot.slane %v247, 2
    %v249 = vadd.f32 %v247, %v248
    %v250 = vrot.slane %v249, 1
    %v251 = vadd.f32 %v249, %v250
    %s252 = vtos %v251
    %vm253 = vmand %vm187, %vm153
    %v254 = vstv %s238
    %v255 = vsel %vm253, %v254, %v226
    %vm256 = vmand %vm191, %vm153
    %v257 = vstv %s252
    %v258 = vsel %vm256, %v257, %v255
    %v259 = vsel %vm92, 1, 0
    %v260 = vcvt.s32.f32 %v259
    %v261 = vsel %vm108, %v260, 0.0
    %262 = vadd.xlane.f32.xlu0 %v261
    %v263 = vpop.xlane.xlu0 %262
    %v264 = vrot.slane %v263, 4
    %v265 = vadd.f32 %v263, %v264
    %v266 = vrot.slane %v265, 2
    %v267 = vadd.f32 %v265, %v266
    %v268 = vrot.slane %v267, 1
    %v269 = vadd.f32 %v267, %v268
    %s270 = vtos %v269
    %vm271 = vcmp.eq.s32.totalorder %v66, 3
    %vm272 = vmand %vm92, %vm271
    %v273 = vsel %vm272, 1, 0
    %v274 = vcvt.s32.f32 %v273
    %v275 = vsel %vm108, %v274, 0.0
    %276 = vadd.xlane.f32.xlu0 %v275
    %v277 = vpop.xlane.xlu0 %276
    %v278 = vrot.slane %v277, 4
    %v279 = vadd.f32 %v277, %v278
    %v280 = vrot.slane %v279, 2
    %v281 = vadd.f32 %v279, %v280
    %v282 = vrot.slane %v281, 1
    %v283 = vadd.f32 %v281, %v282
    %s284 = vtos %v283
    %vm285 = vcmp.eq.s32.totalorder %v147, 3
    %vm286 = vmand %vm187, %vm285
    %v287 = vstv %s270
    %v288 = vsel %vm286, %v287, %v258
    %vm289 = vmand %vm191, %vm285
    %v290 = vstv %s284
    %v291 = vsel %vm289, %v290, %v288
    %v292 = vsel %vm99, 1, 0
    %v293 = vcvt.s32.f32 %v292
    %v294 = vsel %vm108, %v293, 0.0
    %295 = vadd.xlane.f32.xlu0 %v294
    %v296 = vpop.xlane.xlu0 %295
    %v297 = vrot.slane %v296, 4
    %v298 = vadd.f32 %v296, %v297
    %v299 = vrot.slane %v298, 2
    %v300 = vadd.f32 %v298, %v299
    %v301 = vrot.slane %v300, 1
    %v302 = vadd.f32 %v300, %v301
    %s303 = vtos %v302
    %vm304 = vcmp.eq.s32.totalorder %v66, 4
    %vm305 = vmand %vm99, %vm304
    %v306 = vsel %vm305, 1, 0
    %v307 = vcvt.s32.f32 %v306
    %v308 = vsel %vm108, %v307, 0.0
    %309 = vadd.xlane.f32.xlu0 %v308
    %v310 = vpop.xlane.xlu0 %309
    %v311 = vrot.slane %v310, 4
    %v312 = vadd.f32 %v310, %v311
    %v313 = vrot.slane %v312, 2
    %v314 = vadd.f32 %v312, %v313
    %v315 = vrot.slane %v314, 1
    %v316 = vadd.f32 %v314, %v315
    %s317 = vtos %v316
    %vm318 = vcmp.eq.s32.totalorder %v147, 4
    %vm319 = vmand %vm187, %vm318
    %v320 = vstv %s303
    %v321 = vsel %vm319, %v320, %v291
    %vm322 = vmand %vm191, %vm318
    %v323 = vstv %s317
    %v324 = vsel %vm322, %v323, %v321
    %325 = vst [vmem:[#allocation7] sm:$0xff] %v324
    // Predicated region
    $region18: #{tpu_custom_call.1} parent=1 // pred_check
      _
    $region19: #{tpu_custom_call.1} parent=1 // pred_check_branch
      %327 = sbr.rel (0) target = $region21
    $region20: #{tpu_custom_call.1} parent=1 // pred_region
      %329 = vsyncadd [#allocation4], 0
      %s331 = sshll.u32 [#allocation7], 4
      %s332 = int_to_ptr.vmem [resolvable:$true] %s331
      %s333 = sshll.u32 %s2, 4
      %s334 = int_to_ptr.hbm [resolvable:$true] %s333
      %336 = dma.vmem_to_hbm [thread:$0]  %s332, 128, %s334, [#allocation4]
    $region21: #{tpu_custom_call.1} parent=1 // pred_fallthru
      _
    // Predicated region
    $region22: #{tpu_custom_call.1} parent=1 // pred_check
      _
    $region23: #{tpu_custom_call.1} parent=1 // pred_check_branch
      %338 = sbr.rel (0) target = $region25
    $region24: #{tpu_custom_call.1} parent=1 // pred_region
      %340 = vsyncadd [#allocation9], 0
      %s342 = sshll.u32 [#allocation8], 4
      %s343 = int_to_ptr.vmem [resolvable:$true] %s342
      %s344 = sshll.u32 %s3, 4
      %s345 = int_to_ptr.hbm [resolvable:$true] %s344
      %347 = dma.vmem_to_hbm [thread:$0]  %s343, 16, %s345, [#allocation9]
    $region25: #{tpu_custom_call.1} parent=1 // pred_fallthru
      _
    // Predicated region
    $region26: #{tpu_custom_call.1} parent=1 // pred_check
      _
    $region27: #{tpu_custom_call.1} parent=1 // pred_check_branch
      %349 = sbr.rel (0) target = $region29
    $region28: #{tpu_custom_call.1} parent=1 // pred_region
      %351 = dma.done [#allocation4], 128
    $region29: #{tpu_custom_call.1} parent=1 // pred_fallthru
      _
    // Predicated region
    $region30: #{tpu_custom_call.1} parent=1 // pred_check
      _
    $region31: #{tpu_custom_call.1} parent=1 // pred_check_branch
      %353 = sbr.rel (0) target = $region33
    $region32: #{tpu_custom_call.1} parent=1 // pred_region
      %355 = dma.done [#allocation9], 16
    $region33: #{tpu_custom_call.1} parent=1 // pred_fallthru
      _
    %356 = vsyncpa [#allocation3], 1
    %357 = vsyncpa [#allocation6], 1
    %358 = vsyncpa [#allocation4], 1
    %359 = vsyncpa [#allocation9], 1

</llo_original>
